<compile_context>
chip_gen: v7x
topology: tpu7x:2x2x1
jax: 0.10.0
libtpu: 0.0.40
codegen_flags: <defaults>
</compile_context>

<pallas_src>
import jax
import jax.numpy as jnp
from jax.experimental import pallas as pl
from jax.experimental.pallas import tpu as pltpu

IN_DIM, H1, H2, OUT_DIM = 19, 64, 32, 3
DEFAULT_TILE_B = 4096  # batch rows per grid step (lane dim); multiple of 128; sweepable


def _round_up(n, m):
    return ((n + m - 1) // m) * m


def _vmem_limit_bytes(tile_b):
    """Size the scoped VMEM request from the actual (padded) buffer footprint."""
    sub = lambda n: _round_up(n, 8)
    lane = lambda n: _round_up(n, 128)
    # double-buffered x tile (bf16) and out tile (f32), lane dim = tile_b
    io = 2 * sub(IN_DIM) * tile_b * 2 + 2 * sub(OUT_DIM) * tile_b * 4
    # intermediates h1/h2 (f32 accum + bf16 copy)
    mid = (sub(H1) + sub(H2)) * tile_b * 6
    # resident weights (bf16, lane-padded) + biases (f32)
    wb = (sub(H1) * lane(IN_DIM) + sub(H2) * lane(H1) + sub(OUT_DIM) * lane(H2)) * 2
    wb += (sub(H1) + sub(H2) + sub(OUT_DIM)) * lane(1) * 4
    return int((io + mid + wb) * 2 + (4 << 20))  # 2x headroom + 4 MiB slack


def mlp_kernel(x_ref, w1_ref, b1_ref, w2_ref, b2_ref, w3_ref, b3_ref, out_ref):
    # Class-major: x_ref is [IN_DIM, tile_b] bf16; weights are PyTorch [out, in].
    xt = x_ref[...]
    # fc1 + ReLU  (bf16 x bf16 -> f32 accumulate on the MXU, N = tile_b lanes)
    h1 = jnp.dot(w1_ref[...], xt, preferred_element_type=jnp.float32)      # [H1, tb]
    h1 = jnp.maximum(h1 + b1_ref[...], 0.0).astype(jnp.bfloat16)
    # fc2 + ReLU
    h2 = jnp.dot(w2_ref[...], h1, preferred_element_type=jnp.float32)      # [H2, tb]
    h2 = jnp.maximum(h2 + b2_ref[...], 0.0).astype(jnp.bfloat16)
    # fc3
    logits = jnp.dot(w3_ref[...], h2, preferred_element_type=jnp.float32)  # [3, tb]
    logits = logits + b3_ref[...]
    # softmax over the 3-class (sublane) axis via explicit row slices: all ops
    # are full-lane-width [1, tile_b] VPU ops, no XLU class-axis reduction.
    l0 = logits[0:1, :]
    l1 = logits[1:2, :]
    l2 = logits[2:3, :]
    m = jnp.maximum(jnp.maximum(l0, l1), l2)
    e0 = jnp.exp(l0 - m)
    e1 = jnp.exp(l1 - m)
    e2 = jnp.exp(l2 - m)
    inv = 1.0 / (e0 + e1 + e2)  # exact divide -> rows sum to 1 within f32 rounding
    out_ref[0:1, :] = (e0 * inv).astype(out_ref.dtype)
    out_ref[1:2, :] = (e1 * inv).astype(out_ref.dtype)
    out_ref[2:3, :] = (e2 * inv).astype(out_ref.dtype)


def card_game_nn_forward(x, params, *, tile_b=DEFAULT_TILE_B):
    """x: [B, IN_DIM] f32; params in PyTorch layout (w [out,in], b [out,1]).

    Returns softmax probabilities [B, OUT_DIM] f32.
    """
    w1, b1, w2, b2, w3, b3 = params
    B = x.shape[0]

    # Lane dim of the blocks must be a multiple of 128 or equal the full dim:
    #   B >= tile_b  -> tile_b stays a multiple of 128 (ragged last block OK)
    #   B <  tile_b  -> tile_b == B (full dim), single grid step
    tile_b = max(1, min(tile_b, B))
    grid = (pl.cdiv(B, tile_b),)

    # Single fused transpose+cast pass over x (read f32, write bf16).
    xt = x.T.astype(jnp.bfloat16)                      # [IN_DIM, B]
    w1b, w2b, w3b = (w.astype(jnp.bfloat16) for w in (w1, w2, w3))

    def resident(shape):
        # Constant index_map: fetched once, stays VMEM-resident across grid steps.
        return pl.BlockSpec(shape, lambda i: (0, 0))

    flops = 2 * B * (IN_DIM * H1 + H1 * H2 + H2 * OUT_DIM)
    bytes_accessed = (
        xt.size * 2                      # bf16 activations in
        + B * OUT_DIM * 4                # f32 probabilities out
        + (w1b.size + w2b.size + w3b.size) * 2
        + (b1.size + b2.size + b3.size) * 4
    )
    cost = pl.CostEstimate(
        flops=int(flops),
        transcendentals=int(B * OUT_DIM),
        bytes_accessed=int(bytes_accessed),
    )

    out_t = pl.pallas_call(
        mlp_kernel,
        out_shape=jax.ShapeDtypeStruct((OUT_DIM, B), jnp.float32),
        grid=grid,
        in_specs=[
            pl.BlockSpec((IN_DIM, tile_b), lambda i: (0, i)),   # x^T: tiled over batch lanes
            resident((H1, IN_DIM)),
            resident((H1, 1)),
            resident((H2, H1)),
            resident((H2, 1)),
            resident((OUT_DIM, H2)),
            resident((OUT_DIM, 1)),
        ],
        out_specs=pl.BlockSpec((OUT_DIM, tile_b), lambda i: (0, i)),
        compiler_params=pltpu.CompilerParams(
            # TODO(synk): on v7x, verify the batch axis actually splits across the
            # two TensorCores in the trace; if not, switch to CORE_PARALLEL.
            dimension_semantics=("parallel",),
            vmem_limit_bytes=_vmem_limit_bytes(tile_b),
        ),
        cost_estimate=cost,
    )(xt, w1b, b1, w2b, b2, w3b, b3)

    return out_t.T  # [B, OUT_DIM]


def init_params(key):
    ks = jax.random.split(key, 6)

    # Deterministic synthetic init of the right shapes (PyTorch layout:
    # weight [out, in], bias stored as [out, 1] column for class-major math).
    def lin(kw, kb, fan_in, fan_out):
        bound = 1.0 / jnp.sqrt(fan_in)
        w = jax.random.uniform(kw, (fan_out, fan_in), jnp.float32, -bound, bound)
        b = jax.random.uniform(kb, (fan_out, 1), jnp.float32, -bound, bound)
        return w, b

    w1, b1 = lin(ks[0], ks[1], IN_DIM, H1)
    w2, b2 = lin(ks[2], ks[3], H1, H2)
    w3, b3 = lin(ks[4], ks[5], H2, OUT_DIM)
    return (w1, b1, w2, b2, w3, b3)


def reference_forward(x, params):
    """Pure-JAX reference using the same bf16 mixed-precision math as the kernel."""
    w1, b1, w2, b2, w3, b3 = params
    xb = x.astype(jnp.bfloat16)
    w1b, w2b, w3b = (w.astype(jnp.bfloat16) for w in (w1, w2, w3))
    h1 = jnp.dot(xb, w1b.T, preferred_element_type=jnp.float32) + b1.T
    h1 = jnp.maximum(h1, 0.0).astype(jnp.bfloat16)
    h2 = jnp.dot(h1, w2b.T, preferred_element_type=jnp.float32) + b2.T
    h2 = jnp.maximum(h2, 0.0).astype(jnp.bfloat16)
    logits = jnp.dot(h2, w3b.T, preferred_element_type=jnp.float32) + b3.T
    return jax.nn.softmax(logits, axis=1)


if __name__ == "__main__":
    key = jax.random.PRNGKey(0)
    kx, kp = jax.random.split(key)
    B = 8
    x = jax.random.normal(kx, (B, IN_DIM), jnp.float32)
    params = init_params(kp)

    out = card_game_nn_forward(x, params)
    out = jax.block_until_ready(out)

    ref = reference_forward(x, params)
    assert out.shape == (B, OUT_DIM)
    # bf16 matmuls (same path in kernel and reference) -> ~1e-3 agreement.
    assert jnp.allclose(out, ref, atol=2e-3, rtol=2e-3), "mismatch vs reference"
    # Exact normalization divide -> rows sum to 1 within f32 rounding.
    assert jnp.allclose(jnp.sum(out, axis=1), jnp.ones((B,)), atol=1e-3)

    print("KERNEL_OK")
</pallas_src>

<mosaic_0001>
module attributes {stable_mosaic.version = 11 : i64} {
  func.func @mlp_kernel(%arg0: i32, %arg1: memref<19x8xbf16, #tpu.memory_space<vmem>>, %arg2: memref<64x19xbf16, #tpu.memory_space<vmem>>, %arg3: memref<64x1xf32, #tpu.memory_space<vmem>>, %arg4: memref<32x64xbf16, #tpu.memory_space<vmem>>, %arg5: memref<32x1xf32, #tpu.memory_space<vmem>>, %arg6: memref<3x32xbf16, #tpu.memory_space<vmem>>, %arg7: memref<3x1xf32, #tpu.memory_space<vmem>>, %arg8: memref<3x8xf32, #tpu.memory_space<vmem>>) attributes {dimension_semantics = [#tpu.dimension_semantics<parallel>], iteration_bounds = array<i64: 1>, scalar_prefetch = 0 : i64, scratch_operands = 0 : i64, tpu.core_type = #tpu.core_type<tc>, window_params = [{transform_indices = @transform_0, window_bounds = array<i64: 19, 8>}, {pipeline_mode = #tpu.pipeline_mode<synchronous>, transform_indices = @transform_1, window_bounds = array<i64: 64, 19>}, {pipeline_mode = #tpu.pipeline_mode<synchronous>, transform_indices = @transform_2, window_bounds = array<i64: 64, 1>}, {pipeline_mode = #tpu.pipeline_mode<synchronous>, transform_indices = @transform_3, window_bounds = array<i64: 32, 64>}, {pipeline_mode = #tpu.pipeline_mode<synchronous>, transform_indices = @transform_4, window_bounds = array<i64: 32, 1>}, {pipeline_mode = #tpu.pipeline_mode<synchronous>, transform_indices = @transform_5, window_bounds = array<i64: 3, 32>}, {pipeline_mode = #tpu.pipeline_mode<synchronous>, transform_indices = @transform_6, window_bounds = array<i64: 3, 1>}, {transform_indices = @transform_7, window_bounds = array<i64: 3, 8>}]} {
    %c0 = arith.constant 0 : index
    %c0_0 = arith.constant 0 : index
    %0 = vector.load %arg1[%c0, %c0_0] : memref<19x8xbf16, #tpu.memory_space<vmem>>, vector<19x8xbf16>
    %c0_1 = arith.constant 0 : index
    %c0_2 = arith.constant 0 : index
    %1 = vector.load %arg2[%c0_1, %c0_2] : memref<64x19xbf16, #tpu.memory_space<vmem>>, vector<64x19xbf16>
    %cst = arith.constant dense<0.000000e+00> : vector<64x8xf32>
    %2 = tpu.matmul %1, %0, %cst {dimension_numbers = #tpu.dot_dimension_numbers<[1], [0], [0], [1], [0, 0, 1, 1], [], []>} : vector<64x19xbf16>, vector<19x8xbf16>, vector<64x8xf32> -> vector<64x8xf32>
    %c0_3 = arith.constant 0 : index
    %c0_4 = arith.constant 0 : index
    %3 = vector.load %arg3[%c0_3, %c0_4] : memref<64x1xf32, #tpu.memory_space<vmem>>, vector<64x1xf32>
    %4 = vector.broadcast %3 : vector<64x1xf32> to vector<64x8xf32>
    %5 = arith.addf %2, %4 : vector<64x8xf32>
    %cst_5 = arith.constant 0.000000e+00 : f32
    %6 = vector.broadcast %cst_5 : f32 to vector<64x8xf32>
    %7 = arith.maximumf %5, %6 : vector<64x8xf32>
    %8 = arith.truncf %7 : vector<64x8xf32> to vector<64x8xbf16>
    %c0_6 = arith.constant 0 : index
    %c0_7 = arith.constant 0 : index
    %9 = vector.load %arg4[%c0_6, %c0_7] : memref<32x64xbf16, #tpu.memory_space<vmem>>, vector<32x64xbf16>
    %cst_8 = arith.constant dense<0.000000e+00> : vector<32x8xf32>
    %10 = tpu.matmul %9, %8, %cst_8 {dimension_numbers = #tpu.dot_dimension_numbers<[1], [0], [0], [1], [0, 0, 1, 1], [], []>} : vector<32x64xbf16>, vector<64x8xbf16>, vector<32x8xf32> -> vector<32x8xf32>
    %c0_9 = arith.constant 0 : index
    %c0_10 = arith.constant 0 : index
    %11 = vector.load %arg5[%c0_9, %c0_10] : memref<32x1xf32, #tpu.memory_space<vmem>>, vector<32x1xf32>
    %12 = vector.broadcast %11 : vector<32x1xf32> to vector<32x8xf32>
    %13 = arith.addf %10, %12 : vector<32x8xf32>
    %cst_11 = arith.constant 0.000000e+00 : f32
    %14 = vector.broadcast %cst_11 : f32 to vector<32x8xf32>
    %15 = arith.maximumf %13, %14 : vector<32x8xf32>
    %16 = arith.truncf %15 : vector<32x8xf32> to vector<32x8xbf16>
    %c0_12 = arith.constant 0 : index
    %c0_13 = arith.constant 0 : index
    %17 = vector.load %arg6[%c0_12, %c0_13] : memref<3x32xbf16, #tpu.memory_space<vmem>>, vector<3x32xbf16>
    %cst_14 = arith.constant dense<0.000000e+00> : vector<3x8xf32>
    %18 = tpu.matmul %17, %16, %cst_14 {dimension_numbers = #tpu.dot_dimension_numbers<[1], [0], [0], [1], [0, 0, 1, 1], [], []>} : vector<3x32xbf16>, vector<32x8xbf16>, vector<3x8xf32> -> vector<3x8xf32>
    %c0_15 = arith.constant 0 : index
    %c0_16 = arith.constant 0 : index
    %19 = vector.load %arg7[%c0_15, %c0_16] : memref<3x1xf32, #tpu.memory_space<vmem>>, vector<3x1xf32>
    %20 = vector.broadcast %19 : vector<3x1xf32> to vector<3x8xf32>
    %21 = arith.addf %18, %20 : vector<3x8xf32>
    %22 = vector.extract_strided_slice %21 {offsets = [0, 0], sizes = [1, 8], strides = [1, 1]} : vector<3x8xf32> to vector<1x8xf32>
    %23 = vector.extract_strided_slice %21 {offsets = [1, 0], sizes = [1, 8], strides = [1, 1]} : vector<3x8xf32> to vector<1x8xf32>
    %24 = vector.extract_strided_slice %21 {offsets = [2, 0], sizes = [1, 8], strides = [1, 1]} : vector<3x8xf32> to vector<1x8xf32>
    %25 = arith.maximumf %22, %23 : vector<1x8xf32>
    %26 = arith.maximumf %25, %24 : vector<1x8xf32>
    %27 = arith.subf %22, %26 : vector<1x8xf32>
    %28 = math.exp %27 : vector<1x8xf32>
    %29 = arith.subf %23, %26 : vector<1x8xf32>
    %30 = math.exp %29 : vector<1x8xf32>
    %31 = arith.subf %24, %26 : vector<1x8xf32>
    %32 = math.exp %31 : vector<1x8xf32>
    %33 = arith.addf %28, %30 : vector<1x8xf32>
    %34 = arith.addf %33, %32 : vector<1x8xf32>
    %cst_17 = arith.constant 1.000000e+00 : f32
    %35 = vector.broadcast %cst_17 : f32 to vector<1x8xf32>
    %36 = arith.divf %35, %34 : vector<1x8xf32>
    %37 = arith.mulf %28, %36 : vector<1x8xf32>
    %c0_18 = arith.constant 0 : index
    %c0_19 = arith.constant 0 : index
    %38 = vector.load %arg8[%c0_18, %c0_19] : memref<3x8xf32, #tpu.memory_space<vmem>>, vector<1x8xf32>
    tpu.vector_store %arg8[%c0_18, %c0_19], %37 {strides = array<i32>} : memref<3x8xf32, #tpu.memory_space<vmem>>, vector<1x8xf32>,
    %39 = arith.mulf %30, %36 : vector<1x8xf32>
    %c1 = arith.constant 1 : index
    %c0_20 = arith.constant 0 : index
    %40 = vector.load %arg8[%c1, %c0_20] : memref<3x8xf32, #tpu.memory_space<vmem>>, vector<1x8xf32>
    tpu.vector_store %arg8[%c1, %c0_20], %39 {strides = array<i32>} : memref<3x8xf32, #tpu.memory_space<vmem>>, vector<1x8xf32>,
    %41 = arith.mulf %32, %36 : vector<1x8xf32>
    %c2 = arith.constant 2 : index
    %c0_21 = arith.constant 0 : index
    %42 = vector.load %arg8[%c2, %c0_21] : memref<3x8xf32, #tpu.memory_space<vmem>>, vector<1x8xf32>
    tpu.vector_store %arg8[%c2, %c0_21], %41 {strides = array<i32>} : memref<3x8xf32, #tpu.memory_space<vmem>>, vector<1x8xf32>,
    return
  }
  func.func @transform_0(%arg0: i32) -> (i32, i32) {
    %c0_i32 = arith.constant 0 : i32
    %c0_i32_0 = arith.constant 0 : i32
    return %c0_i32, %arg0 : i32, i32
  }
  func.func @transform_1(%arg0: i32) -> (i32, i32) {
    %c0_i32 = arith.constant 0 : i32
    %c0_i32_0 = arith.constant 0 : i32
    %c0_i32_1 = arith.constant 0 : i32
    return %c0_i32, %c0_i32_0 : i32, i32
  }
  func.func @transform_2(%arg0: i32) -> (i32, i32) {
    %c0_i32 = arith.constant 0 : i32
    %c0_i32_0 = arith.constant 0 : i32
    %c0_i32_1 = arith.constant 0 : i32
    return %c0_i32, %c0_i32_0 : i32, i32
  }
  func.func @transform_3(%arg0: i32) -> (i32, i32) {
    %c0_i32 = arith.constant 0 : i32
    %c0_i32_0 = arith.constant 0 : i32
    %c0_i32_1 = arith.constant 0 : i32
    return %c0_i32, %c0_i32_0 : i32, i32
  }
  func.func @transform_4(%arg0: i32) -> (i32, i32) {
    %c0_i32 = arith.constant 0 : i32
    %c0_i32_0 = arith.constant 0 : i32
    %c0_i32_1 = arith.constant 0 : i32
    return %c0_i32, %c0_i32_0 : i32, i32
  }
  func.func @transform_5(%arg0: i32) -> (i32, i32) {
    %c0_i32 = arith.constant 0 : i32
    %c0_i32_0 = arith.constant 0 : i32
    %c0_i32_1 = arith.constant 0 : i32
    return %c0_i32, %c0_i32_0 : i32, i32
  }
  func.func @transform_6(%arg0: i32) -> (i32, i32) {
    %c0_i32 = arith.constant 0 : i32
    %c0_i32_0 = arith.constant 0 : i32
    %c0_i32_1 = arith.constant 0 : i32
    return %c0_i32, %c0_i32_0 : i32, i32
  }
  func.func @transform_7(%arg0: i32) -> (i32, i32) {
    %c0_i32 = arith.constant 0 : i32
    %c0_i32_0 = arith.constant 0 : i32
    return %c0_i32, %arg0 : i32, i32
  }
}

</mosaic_0001>

<llo_original>
// kernel: tpu_custom_call.1
$region0: #{tpu_custom_call.1}
  #allocation0 [shape = 'u32[]', space=smem, size = 0x4, offset = 0x4, fixed_abs, tag = 'smem constant byte address 0x4 - core index']
  #allocation1 [shape = 'u32[144,128]{1,0:T(1,128)}', space=vmem, size = 0x12000, scoped, tag = 'internal scratch']
  %s0 = inlined_call_operand.vmem [shape: bf16[19,8], index: 0, kind: input, shape index: {}]
  %s1 = inlined_call_operand.vmem [shape: bf16[64,19], index: 1, kind: input, shape index: {}]
  %s2 = inlined_call_operand.vmem [shape: f32[64,1], index: 2, kind: input, shape index: {}]
  %s3 = inlined_call_operand.vmem [shape: bf16[32,64], index: 3, kind: input, shape index: {}]
  %s4 = inlined_call_operand.vmem [shape: f32[32,1], index: 4, kind: input, shape index: {}]
  %s5 = inlined_call_operand.vmem [shape: bf16[3,32], index: 5, kind: input, shape index: {}]
  %s6 = inlined_call_operand.vmem [shape: f32[3,1], index: 6, kind: input, shape index: {}]
  %s7 = inlined_call_operand.hbm [shape: f32[3,8], index: 7, kind: output, shape index: {}]
  %s8 = sld [smem:[#allocation0]]
  $region38: #{tpu_custom_call.1} parent=0
    _
  %s10 = ssub.s32 1, %s8
  %s11 = scalar_select 0, %s10, %s8
  $region1: #{tpu_custom_call.1} parent=0
    #allocation2 [shape = 'u8[2048]{0}', space=vmem, size = 0x800, scoped, tag = 'output window, operand 0, single buffered']
    #allocation3 [shape = 's32[1]{0}', space=sflag, size = 0x4, scoped, tag = 'scoped memory for tpu_custom_call.1']
    %12 = vsyncpa [#allocation3], 0
    // Predicated region
    $region2: #{tpu_custom_call.1} parent=1 // pred_check
      _
    $region3: #{tpu_custom_call.1} parent=1 // pred_check_branch
      %14 = sbr.rel (0) target = $region5
    $region4: #{tpu_custom_call.1} parent=1 // pred_region
      _
    $region5: #{tpu_custom_call.1} parent=1 // pred_fallthru
      _
    // Predicated region
    $region6: #{tpu_custom_call.1} parent=1 // pred_check
      _
    $region7: #{tpu_custom_call.1} parent=1 // pred_check_branch
      %16 = sbr.rel (0) target = $region9
    $region8: #{tpu_custom_call.1} parent=1 // pred_region
      _
    $region9: #{tpu_custom_call.1} parent=1 // pred_fallthru
      _
    // Predicated region
    $region10: #{tpu_custom_call.1} parent=1 // pred_check
      _
    $region11: #{tpu_custom_call.1} parent=1 // pred_check_branch
      %18 = sbr.rel (0) target = $region13
    $region12: #{tpu_custom_call.1} parent=1 // pred_region
      _
    $region13: #{tpu_custom_call.1} parent=1 // pred_fallthru
      _
    // Predicated region
    $region14: #{tpu_custom_call.1} parent=1 // pred_check
      _
    $region15: #{tpu_custom_call.1} parent=1 // pred_check_branch
      %20 = sbr.rel (0) target = $region17
    $region16: #{tpu_custom_call.1} parent=1 // pred_region
      _
    $region17: #{tpu_custom_call.1} parent=1 // pred_fallthru
      _
    // Predicated region
    $region18: #{tpu_custom_call.1} parent=1 // pred_check
      _
    $region19: #{tpu_custom_call.1} parent=1 // pred_check_branch
      %22 = sbr.rel (0) target = $region21
    $region20: #{tpu_custom_call.1} parent=1 // pred_region
      _
    $region21: #{tpu_custom_call.1} parent=1 // pred_fallthru
      _
    // Predicated region
    $region22: #{tpu_custom_call.1} parent=1 // pred_check
      _
    $region23: #{tpu_custom_call.1} parent=1 // pred_check_branch
      %24 = sbr.rel (0) target = $region25
    $region24: #{tpu_custom_call.1} parent=1 // pred_region
      _
    $region25: #{tpu_custom_call.1} parent=1 // pred_fallthru
      _
    // Predicated region
    $region26: #{tpu_custom_call.1} parent=1 // pred_check
      _
    $region27: #{tpu_custom_call.1} parent=1 // pred_check_branch
      %26 = sbr.rel (0) target = $region29
    $region28: #{tpu_custom_call.1} parent=1 // pred_region
      _
    $region29: #{tpu_custom_call.1} parent=1 // pred_fallthru
      _
    %v28 = vld [vmem:[%s0] sm:$0xf]
    %v29 = vld [vmem:[%s0 + $0x4] sm:$0xf]
    %v30 = vld [vmem:[%s0 + $0x8] sm:$0x3]
    %v31 = vld [vmem:[%s1] sm:$0xf]
    %v32 = vld [vmem:[%s1 + $0x4] sm:$0xf]
    %v33 = vld [vmem:[%s1 + $0x8] sm:$0xf]
    %v34 = vld [vmem:[%s1 + $0xc] sm:$0xf]
    %v35 = vld [vmem:[%s1 + $0x10] sm:$0xf]
    %v36 = vld [vmem:[%s1 + $0x14] sm:$0xf]
    %v37 = vld [vmem:[%s1 + $0x18] sm:$0xf]
    %v38 = vld [vmem:[%s1 + $0x1c] sm:$0xf]
    %v39 = vld [vmem:[%s2] sm:$0xff]
    %v40 = vld [vmem:[%s2 + $0x8] sm:$0xff]
    %v41 = vld [vmem:[%s2 + $0x10] sm:$0xff]
    %v42 = vld [vmem:[%s2 + $0x18] sm:$0xff]
    %v43 = vld [vmem:[%s2 + $0x20] sm:$0xff]
    %v44 = vld [vmem:[%s2 + $0x28] sm:$0xff]
    %v45 = vld [vmem:[%s2 + $0x30] sm:$0xff]
    %v46 = vld [vmem:[%s2 + $0x38] sm:$0xff]
    %48 = vset.pattern.permute.xlu0 0
    %49 = vperm.xlu0 %48, %v39
    %v50 = vpop.permute.xlu0 %49
    %53 = vset.pattern.permute.xlu0 0
    %54 = vperm.xlu0 %53, %v40
    %v55 = vpop.permute.xlu0 %54
    %58 = vset.pattern.permute.xlu0 0
    %59 = vperm.xlu0 %58, %v41
    %v60 = vpop.permute.xlu0 %59
    %63 = vset.pattern.permute.xlu0 0
    %64 = vperm.xlu0 %63, %v42
    %v65 = vpop.permute.xlu0 %64
    %68 = vset.pattern.permute.xlu0 0
    %69 = vperm.xlu0 %68, %v43
    %v70 = vpop.permute.xlu0 %69
    %73 = vset.pattern.permute.xlu0 0
    %74 = vperm.xlu0 %73, %v44
    %v75 = vpop.permute.xlu0 %74
    %78 = vset.pattern.permute.xlu0 0
    %79 = vperm.xlu0 %78, %v45
    %v80 = vpop.permute.xlu0 %79
    %83 = vset.pattern.permute.xlu0 0
    %84 = vperm.xlu0 %83, %v46
    %v85 = vpop.permute.xlu0 %84
    %v95 = vunpack.c.l.b16 %v31
    %v96 = vunpack.c.l.b16 %v32
    %v97 = vunpack.c.l.b16 %v33
    %v98 = vunpack.c.l.b16 %v34
    %v99 = vunpack.c.l.b16 %v35
    %v100 = vunpack.c.l.b16 %v36
    %v101 = vunpack.c.l.b16 %v37
    %v102 = vunpack.c.l.b16 %v38
    %v103 = vpack.c.b16 %v96, %v95
    %v104 = vpack.c.b16 %v98, %v97
    %v105 = vpack.c.b16 %v100, %v99
    %v106 = vpack.c.b16 %v102, %v101
    %v110 = vunpack.c.l.b16 %v28
    %v111 = vunpack.c.l.b16 %v29
    %v112 = vunpack.c.l.b16 %v30
    %v113 = vpack.c.b16 %v111, %v110
    %v114 = vpack.c.b16 %v112, %v112
    %vm116 = vcmask 154624
    %v118 = vsel %vm116, %v103, 0
    %v121 = vsel %vm116, %v104, 0
    %v124 = vsel %vm116, %v105, 0
    %v127 = vsel %vm116, %v106, 0
    %vm129 = vcmask 1040384
    %vm130 = vcmask 1041408
    %v131 = vsel %vm129, 4294967295, 65535
    %v132 = vsel %vm130, %v131, 0
    %v134 = vand.u32 %v114, %v132
    %136 = vmatprep.subr.bf16.mxu0 0
    %137 = vmatpush1.bf16.msra.mxu0 %v113
    %138 = vmatprep.subr.bf16.mxu0 0
    %139 = vmatpush1.bf16.msra.mxu0 %v134
    %140 = vmatprep.subr.bf16.mxu0 0
    %141 = vmatpush1.bf16.msra.mxu0 0
    %142 = vmatprep.subr.bf16.mxu0 0
    %143 = vmatpush1.bf16.msra.mxu0 0
    %144 = vmatprep.subr.bf16.mxu0 0
    %145 = vmatpush1.bf16.msra.mxu0 0
    %146 = vmatprep.subr.bf16.mxu0 0
    %147 = vmatpush1.bf16.msra.mxu0 0
    %148 = vmatprep.subr.bf16.mxu0 0
    %149 = vmatpush1.bf16.msra.mxu0 0
    %150 = vmatprep.subr.bf16.mxu0 0
    %151 = vmatpush1.bf16.msra.mxu0 0
    %152 = vmatprep.subr.bf16.mxu0 0
    %153 = vmatpush1.bf16.msra.mxu0 0
    %154 = vmatprep.subr.bf16.mxu0 0
    %155 = vmatpush1.bf16.msra.mxu0 0
    %156 = vmatprep.subr.bf16.mxu0 0
    %157 = vmatpush1.bf16.msra.mxu0 0
    %158 = vmatprep.subr.bf16.mxu0 0
    %159 = vmatpush1.bf16.msra.mxu0 0
    %160 = vmatprep.subr.bf16.mxu0 0
    %161 = vmatpush1.bf16.msra.mxu0 0
    %162 = vmatprep.subr.bf16.mxu0 0
    %163 = vmatpush1.bf16.msra.mxu0 0
    %164 = vmatprep.subr.bf16.mxu0 0
    %165 = vmatpush1.bf16.msra.mxu0 0
    %166 = vmatprep.subr.bf16.mxu0 0
    %167 = vmatpush1.bf16.msra.mxu0 0
    %168 = vmatprep.mubr.bf16.mxu0 0
    %169 = vmatmul.mubr.bf16.gmra.mrb[0].mxu0 %v118
    %v170 = vpop.f32.mrb[0].mxu0
    %v171 = vadd.f32 %v50, %v170
    %v172 = vpop.f32.mrb[0].mxu0
    %v173 = vpop.f32.mrb[0].mxu0
    %v174 = vadd.f32 %v55, %v173
    %v175 = vpop.f32.mrb[0].mxu0
    %176 = vmatprep.mubr.bf16.mxu0 0
    %177 = vmatmul.mubr.bf16.gmra.mrb[0].mxu0 %v121
    %v178 = vpop.f32.mrb[0].mxu0
    %v179 = vadd.f32 %v60, %v178
    %v180 = vpop.f32.mrb[0].mxu0
    %v181 = vpop.f32.mrb[0].mxu0
    %v182 = vadd.f32 %v65, %v181
    %v183 = vpop.f32.mrb[0].mxu0
    %184 = vmatprep.mubr.bf16.mxu0 0
    %185 = vmatmul.mubr.bf16.gmra.mrb[0].mxu0 %v124
    %v186 = vpop.f32.mrb[0].mxu0
    %v187 = vadd.f32 %v70, %v186
    %v188 = vpop.f32.mrb[0].mxu0
    %v189 = vpop.f32.mrb[0].mxu0
    %v190 = vadd.f32 %v75, %v189
    %v191 = vpop.f32.mrb[0].mxu0
    %192 = vmatprep.mubr.bf16.mxu0 0
    %193 = vmatmul.mubr.bf16.gmra.mrb[0].mxu0 %v127
    %v194 = vpop.f32.mrb[0].mxu0
    %v195 = vadd.f32 %v80, %v194
    %v196 = vpop.f32.mrb[0].mxu0
    %v197 = vpop.f32.mrb[0].mxu0
    %v198 = vadd.f32 %v85, %v197
    %v199 = vpop.f32.mrb[0].mxu0
    %200 = vdwg.mxu0
    %v201 = vmax.f32 %v171, 0.0
    %v202 = vmax.f32 %v174, 0.0
    %v203 = vmax.f32 %v179, 0.0
    %v204 = vmax.f32 %v182, 0.0
    %v205 = vmax.f32 %v187, 0.0
    %v206 = vmax.f32 %v190, 0.0
    %v207 = vmax.f32 %v195, 0.0
    %v208 = vmax.f32 %v198, 0.0
    %v209 = vpack.c.bf16 %v202, %v201
    %v210 = vpack.c.bf16 %v204, %v203
    %v211 = vpack.c.bf16 %v206, %v205
    %v212 = vpack.c.bf16 %v208, %v207
    %v213 = vld [vmem:[%s3] sm:$0xf]
    %v214 = vld [vmem:[%s3 + $0x4] sm:$0xf]
    %v215 = vld [vmem:[%s3 + $0x8] sm:$0xf]
    %v216 = vld [vmem:[%s3 + $0xc] sm:$0xf]
    %v217 = vld [vmem:[%s4] sm:$0xff]
    %v218 = vld [vmem:[%s4 + $0x8] sm:$0xff]
    %v219 = vld [vmem:[%s4 + $0x10] sm:$0xff]
    %v220 = vld [vmem:[%s4 + $0x18] sm:$0xff]
    %222 = vset.pattern.permute.xlu0 0
    %223 = vperm.xlu0 %222, %v217
    %v224 = vpop.permute.xlu0 %223
    %227 = vset.pattern.permute.xlu0 0
    %228 = vperm.xlu0 %227, %v218
    %v229 = vpop.permute.xlu0 %228
    %232 = vset.pattern.permute.xlu0 0
    %233 = vperm.xlu0 %232, %v219
    %v234 = vpop.permute.xlu0 %233
    %237 = vset.pattern.permute.xlu0 0
    %238 = vperm.xlu0 %237, %v220
    %v239 = vpop.permute.xlu0 %238
    %v245 = vunpack.c.l.b16 %v213
    %v246 = vunpack.c.l.b16 %v214
    %v247 = vunpack.c.l.b16 %v215
    %v248 = vunpack.c.l.b16 %v216
    %v249 = vpack.c.b16 %v246, %v245
    %v250 = vpack.c.b16 %v248, %v247
    %vm251 = vcmask 523264
    %v253 = vsel %vm251, %v249, 0
    %v256 = vsel %vm251, %v250, 0
    %258 = vmatprep.subr.bf16.mxu0 0
    %259 = vmatpush1.bf16.msra.mxu0 %v209
    %260 = vmatprep.subr.bf16.mxu0 0
    %261 = vmatpush1.bf16.msra.mxu0 %v210
    %262 = vmatprep.subr.bf16.mxu0 0
    %263 = vmatpush1.bf16.msra.mxu0 %v211
    %264 = vmatprep.subr.bf16.mxu0 0
    %265 = vmatpush1.bf16.msra.mxu0 %v212
    %266 = vmatprep.subr.bf16.mxu0 0
    %267 = vmatpush1.bf16.msra.mxu0 0
    %268 = vmatprep.subr.bf16.mxu0 0
    %269 = vmatpush1.bf16.msra.mxu0 0
    %270 = vmatprep.subr.bf16.mxu0 0
    %271 = vmatpush1.bf16.msra.mxu0 0
    %272 = vmatprep.subr.bf16.mxu0 0
    %273 = vmatpush1.bf16.msra.mxu0 0
    %274 = vmatprep.subr.bf16.mxu0 0
    %275 = vmatpush1.bf16.msra.mxu0 0
    %276 = vmatprep.subr.bf16.mxu0 0
    %277 = vmatpush1.bf16.msra.mxu0 0
    %278 = vmatprep.subr.bf16.mxu0 0
    %279 = vmatpush1.bf16.msra.mxu0 0
    %280 = vmatprep.subr.bf16.mxu0 0
    %281 = vmatpush1.bf16.msra.mxu0 0
    %282 = vmatprep.subr.bf16.mxu0 0
    %283 = vmatpush1.bf16.msra.mxu0 0
    %284 = vmatprep.subr.bf16.mxu0 0
    %285 = vmatpush1.bf16.msra.mxu0 0
    %286 = vmatprep.subr.bf16.mxu0 0
    %287 = vmatpush1.bf16.msra.mxu0 0
    %288 = vmatprep.subr.bf16.mxu0 0
    %289 = vmatpush1.bf16.msra.mxu0 0
    %290 = vmatprep.mubr.bf16.mxu0 0
    %291 = vmatmul.mubr.bf16.gmra.mrb[0].mxu0 %v253
    %v292 = vpop.f32.mrb[0].mxu0
    %v293 = vadd.f32 %v224, %v292
    %v294 = vpop.f32.mrb[0].mxu0
    %v295 = vpop.f32.mrb[0].mxu0
    %v296 = vadd.f32 %v229, %v295
    %v297 = vpop.f32.mrb[0].mxu0
    %298 = vmatprep.mubr.bf16.mxu0 0
    %299 = vmatmul.mubr.bf16.gmra.mrb[0].mxu0 %v256
    %v300 = vpop.f32.mrb[0].mxu0
    %v301 = vadd.f32 %v234, %v300
    %v302 = vpop.f32.mrb[0].mxu0
    %v303 = vpop.f32.mrb[0].mxu0
    %v304 = vadd.f32 %v239, %v303
    %v305 = vpop.f32.mrb[0].mxu0
    %306 = vdwg.mxu0
    %v307 = vmax.f32 %v293, 0.0
    %v308 = vmax.f32 %v296, 0.0
    %v309 = vmax.f32 %v301, 0.0
    %v310 = vmax.f32 %v304, 0.0
    %v311 = vpack.c.bf16 %v308, %v307
    %v312 = vpack.c.bf16 %v310, %v309
    %v313 = vld [vmem:[%s5] sm:$0x3]
    %v314 = vld [vmem:[%s6] sm:$0x7]
    %316 = vset.pattern.permute.xlu0 0
    %317 = vperm.xlu0 %316, %v314
    %v318 = vpop.permute.xlu0 %317
    %vm320 = vcmask 261120
    %v322 = vsel %vm320, %v313, 0
    %324 = vmatprep.subr.bf16.mxu0 0
    %325 = vmatpush1.bf16.msra.mxu0 %v311
    %326 = vmatprep.subr.bf16.mxu0 0
    %327 = vmatpush1.bf16.msra.mxu0 %v312
    %328 = vmatprep.subr.bf16.mxu0 0
    %329 = vmatpush1.bf16.msra.mxu0 0
    %330 = vmatprep.subr.bf16.mxu0 0
    %331 = vmatpush1.bf16.msra.mxu0 0
    %332 = vmatprep.subr.bf16.mxu0 0
    %333 = vmatpush1.bf16.msra.mxu0 0
    %334 = vmatprep.subr.bf16.mxu0 0
    %335 = vmatpush1.bf16.msra.mxu0 0
    %336 = vmatprep.subr.bf16.mxu0 0
    %337 = vmatpush1.bf16.msra.mxu0 0
    %338 = vmatprep.subr.bf16.mxu0 0
    %339 = vmatpush1.bf16.msra.mxu0 0
    %340 = vmatprep.subr.bf16.mxu0 0
    %341 = vmatpush1.bf16.msra.mxu0 0
    %342 = vmatprep.subr.bf16.mxu0 0
    %343 = vmatpush1.bf16.msra.mxu0 0
    %344 = vmatprep.subr.bf16.mxu0 0
    %345 = vmatpush1.bf16.msra.mxu0 0
    %346 = vmatprep.subr.bf16.mxu0 0
    %347 = vmatpush1.bf16.msra.mxu0 0
    %348 = vmatprep.subr.bf16.mxu0 0
    %349 = vmatpush1.bf16.msra.mxu0 0
    %350 = vmatprep.subr.bf16.mxu0 0
    %351 = vmatpush1.bf16.msra.mxu0 0
    %352 = vmatprep.subr.bf16.mxu0 0
    %353 = vmatpush1.bf16.msra.mxu0 0
    %354 = vmatprep.subr.bf16.mxu0 0
    %355 = vmatpush1.bf16.msra.mxu0 0
    %356 = vmatprep.mubr.bf16.mxu0 0
    %357 = vmatmul.mubr.bf16.gmra.mrb[0].mxu0 %v322
    %v358 = vpop.f32.mrb[0].mxu0
    %v359 = vadd.f32 %v318, %v358
    %v360 = vpop.f32.mrb[0].mxu0
    %v361 = vpop.f32.mrb[0].mxu0
    %v362 = vpop.f32.mrb[0].mxu0
    %363 = vdwg.mxu0
    %v365 = vrot.slane %v359, 1
    %v367 = vmax.f32 %v359, %v365
    %v368 = vrot.slane %v359, 2
    %v370 = vmax.f32 %v367, %v368
    %v371 = vsub.f32 %v359, %v370
    %v372 = vmul.f32 %v371, 1.442695
    %v373 = vpow.pop %v372
    %v375 = vrot.slane %v370, 7
    %v377 = vsub.f32 %v359, %v375
    %v378 = vmul.f32 %v377, 1.442695
    %v379 = vpow.pop %v378
    %v380 = vrot.slane %v370, 6
    %v382 = vsub.f32 %v359, %v380
    %v383 = vmul.f32 %v382, 1.442695
    %v384 = vpow.pop %v383
    %v386 = vrot.slane %v379, 1
    %v388 = vadd.f32 %v373, %v386
    %v390 = vrot.slane %v384, 2
    %v392 = vadd.f32 %v388, %v390
    %v393 = vrcp.pop %v392
    %v394 = vmul.f32 1.0, %v393
    %v395 = vmul.f32 %v373, %v394
    %vm396 = vcmask 57344
    %397 = vst.msk [vmem:[#allocation2] sm:$0x1] %vm396, %v395
    %v399 = vrot.slane %v394, 7
    %v401 = vmul.f32 %v379, %v399
    %vm402 = vcmask 58369
    %403 = vst.msk [vmem:[#allocation2] sm:$0x2] %vm402, %v401
    %v404 = vrot.slane %v394, 6
    %v406 = vmul.f32 %v384, %v404
    %vm407 = vcmask 59394
    %408 = vst.msk [vmem:[#allocation2] sm:$0x4] %vm407, %v406
    // Predicated region
    $region30: #{tpu_custom_call.1} parent=1 // pred_check
      _
    $region31: #{tpu_custom_call.1} parent=1 // pred_check_branch
      %410 = sbr.rel (0) target = $region33
    $region32: #{tpu_custom_call.1} parent=1 // pred_region
      %s412 = ssub.s32 64, 64
      %413 = vsyncadd [#allocation3], %s412
      %s415 = sshll.u32 [#allocation2], 4
      %s416 = int_to_ptr.vmem [resolvable:$true] %s415
      %418 = dma.vmem_to_hbm [thread:$0]  %s416, 64, %s7, [#allocation3]
    $region33: #{tpu_custom_call.1} parent=1 // pred_fallthru
      _
    // Predicated region
    $region34: #{tpu_custom_call.1} parent=1 // pred_check
      _
    $region35: #{tpu_custom_call.1} parent=1 // pred_check_branch
      %420 = sbr.rel (0) target = $region37
    $region36: #{tpu_custom_call.1} parent=1 // pred_region
      %421 = dma.done [#allocation3], 64
    $region37: #{tpu_custom_call.1} parent=1 // pred_fallthru
      _
    %422 = vsyncpa [#allocation3], 1

</llo_original>
